<compile_context>
chip_gen: v7x
topology: tpu7x:2x2x1
jax: 0.10.0
libtpu: 0.0.40
codegen_flags: <defaults>
</compile_context>

<pallas_src>
import functools

import jax
import jax.numpy as jnp
from jax.experimental import pallas as pl
from jax.experimental.pallas import tpu as pltpu


def _logreg_kernel(x_ref, w_ref, b_ref, o_ref):
    # x_ref: (TB, D)          input tile   (VMEM, auto-pipelined over the batch grid)
    # w_ref: (1, D)           weight row   (VMEM, resident across all grid steps)
    # b_ref: (1, 1)           bias scalar  (SMEM)
    # o_ref: (TB//128, 128)   sigmoid(logits), lane-dense layout
    x = x_ref[...].astype(jnp.float32)          # keep accumulation in f32 (bf16-safe on v5e too)
    w = w_ref[...].astype(jnp.float32)          # (1, D) broadcasts over rows (VPU)
    logits = jnp.sum(x * w, axis=-1, keepdims=True)        # (TB, 1) XLU lane reduce
    rows, lanes = o_ref.shape
    dense = logits.reshape(rows, lanes)         # sublane->lane relayout: few dense vregs
    dense = dense + b_ref[0, 0]
    o_ref[...] = jax.nn.sigmoid(dense).astype(o_ref.dtype)  # EUP + unmasked full-lane stores


@functools.partial(jax.jit, static_argnames=("block_rows",))
def emotion_logreg_forward(x, weight, bias, *, block_rows=16384):
    """x: (B, D) f32 or bf16; weight: (1, D) (PyTorch layout); bias: (1,). Returns (B, 1) f32."""
    B, D = x.shape
    w = weight.reshape(1, D).astype(jnp.float32)    # tiny; keep lane-dense (1, D) layout
    b = bias.reshape(1, 1).astype(jnp.float32)

    # Batch tile: multiple of 128 (lane-dense output reshape; also covers bf16's
    # 16-row sublane packing), no larger than needed for small batches.
    tb = min(block_rows, B)
    tb = max(128, ((tb + 127) // 128) * 128)
    num_blocks = pl.cdiv(B, tb)                     # partial last block handled by Pallas (no jnp.pad)

    # VMEM budget: x tile is lane-padded 42->128 in VMEM, double-buffered; output
    # and weight are comparatively tiny. Cap below v7x's 64 MiB physical VMEM.
    itemsize = jnp.dtype(x.dtype).itemsize
    vmem_need = 2 * tb * 128 * itemsize + 2 * tb * 4 + (4 << 20)
    vmem_limit = int(min(max(vmem_need, 32 << 20), 56 << 20))

    out = pl.pallas_call(
        _logreg_kernel,
        out_shape=jax.ShapeDtypeStruct((num_blocks, tb // 128, 128), jnp.float32),
        grid=(num_blocks,),
        in_specs=[
            pl.BlockSpec((tb, D), lambda i: (i, 0),
                         memory_space=pltpu.MemorySpace.VMEM),   # x: tiled over batch
            pl.BlockSpec((1, D), lambda i: (0, 0),
                         memory_space=pltpu.MemorySpace.VMEM),   # weight: resident
            pl.BlockSpec(memory_space=pltpu.MemorySpace.SMEM),   # bias: scalar in SMEM
        ],
        out_specs=pl.BlockSpec((None, tb // 128, 128), lambda i: (i, 0, 0),
                               memory_space=pltpu.MemorySpace.VMEM),
        compiler_params=pltpu.CompilerParams(
            dimension_semantics=("parallel",),      # independent batch blocks
            vmem_limit_bytes=vmem_limit,
        ),
    )(x, w, b)
    # (num_blocks, tb//128, 128) -> (num_blocks*tb, 1); drop rows from the partial last block.
    return out.reshape(-1, 1)[:B]


if __name__ == "__main__":
    # Notebook: fft_0_a..fft_20_a (21) + fft_0_b..fft_20_b (21) -> input_size = 42
    input_size = 42
    output_size = 1
    batch = 300          # small, non-multiple of the tile -> exercises partial-block handling

    key = jax.random.PRNGKey(0)
    kx, kw, kb = jax.random.split(key, 3)

    # Deterministic parameter init mimicking torch.nn.Linear default:
    # uniform(-1/sqrt(in_features), 1/sqrt(in_features))
    bound = 1.0 / (input_size ** 0.5)
    weight = jax.random.uniform(kw, (output_size, input_size),
                                minval=-bound, maxval=bound, dtype=jnp.float32)
    bias = jax.random.uniform(kb, (output_size,),
                              minval=-bound, maxval=bound, dtype=jnp.float32)
    x = jax.random.normal(kx, (batch, input_size), dtype=jnp.float32)

    # Small tile here so the grid has >1 step and a partial last block (300 = 2*128 + 44).
    y = emotion_logreg_forward(x, weight, bias, block_rows=128)
    y = jax.block_until_ready(y)

    # Correctness vs. plain-JAX reference of the PyTorch forward (elementwise f32 math).
    y_ref = jax.nn.sigmoid(jnp.sum(x * weight[0], axis=-1, keepdims=True) + bias)
    assert y.shape == (batch, 1)
    assert jnp.allclose(y, y_ref, atol=1e-6, rtol=1e-5), float(jnp.max(jnp.abs(y - y_ref)))

    # bf16 input path (halves HBM read traffic); default tile -> single partial block.
    x_bf16 = x.astype(jnp.bfloat16)
    y_bf = jax.block_until_ready(emotion_logreg_forward(x_bf16, weight, bias))
    y_bf_ref = jax.nn.sigmoid(
        jnp.sum(x_bf16.astype(jnp.float32) * weight[0], axis=-1, keepdims=True) + bias)
    assert jnp.allclose(y_bf, y_bf_ref, atol=1e-5, rtol=1e-5)

    print("KERNEL_OK")
</pallas_src>

<mosaic_0001>
module attributes {stable_mosaic.version = 11 : i64} {
  func.func @_logreg_kernel(%arg0: i32, %arg1: memref<128x42xf32, #tpu.memory_space<vmem>>, %arg2: memref<1x42xf32, #tpu.memory_space<vmem>>, %arg3: memref<1x1xf32, #tpu.memory_space<smem>>, %arg4: memref<1x1x128xf32, #tpu.memory_space<vmem>>) attributes {dimension_semantics = [#tpu.dimension_semantics<parallel>], iteration_bounds = array<i64: 3>, scalar_prefetch = 0 : i64, scratch_operands = 0 : i64, tpu.core_type = #tpu.core_type<tc>, window_params = [{transform_indices = @transform_0, window_bounds = array<i64: 128, 42>}, {pipeline_mode = #tpu.pipeline_mode<synchronous>, transform_indices = @transform_1, window_bounds = array<i64: 1, 42>}, {transform_indices = @transform_2, window_bounds = array<i64: 1, 1>}, {transform_indices = @transform_3, window_bounds = array<i64: 1, 1, 128>}]} {
    %c0 = arith.constant 0 : index
    %c0_0 = arith.constant 0 : index
    %0 = vector.load %arg1[%c0, %c0_0] : memref<128x42xf32, #tpu.memory_space<vmem>>, vector<128x42xf32>
    %c0_1 = arith.constant 0 : index
    %c0_2 = arith.constant 0 : index
    %1 = vector.load %arg2[%c0_1, %c0_2] : memref<1x42xf32, #tpu.memory_space<vmem>>, vector<1x42xf32>
    %2 = vector.broadcast %1 : vector<1x42xf32> to vector<128x42xf32>
    %3 = arith.mulf %0, %2 : vector<128x42xf32>
    %cst = arith.constant dense<0.000000e+00> : vector<128xf32>
    %4 = vector.multi_reduction <add>, %3, %cst [1] : vector<128x42xf32> to vector<128xf32>
    %5 = vector.shape_cast %4 : vector<128xf32> to vector<128x1xf32>
    %6 = vector.shape_cast %5 : vector<128x1xf32> to vector<1x128xf32>
    %c0_3 = arith.constant 0 : index
    %c0_4 = arith.constant 0 : index
    %7 = memref.load %arg3[%c0_3, %c0_4] : memref<1x1xf32, #tpu.memory_space<smem>>
    %8 = vector.broadcast %7 : f32 to vector<1x128xf32>
    %9 = arith.addf %6, %8 : vector<1x128xf32>
    %10 = arith.negf %9 : vector<1x128xf32>
    %11 = math.exp %10 : vector<1x128xf32>
    %cst_5 = arith.constant 1.000000e+00 : f32
    %12 = vector.broadcast %cst_5 : f32 to vector<1x128xf32>
    %13 = arith.addf %12, %11 : vector<1x128xf32>
    %14 = arith.divf %12, %13 : vector<1x128xf32>
    %c0_6 = arith.constant 0 : index
    %c0_7 = arith.constant 0 : index
    %c0_8 = arith.constant 0 : index
    %15 = vector.load %arg4[%c0_6, %c0_7, %c0_8] : memref<1x1x128xf32, #tpu.memory_space<vmem>>, vector<1x1x128xf32>
    %16 = vector.shape_cast %15 : vector<1x1x128xf32> to vector<1x128xf32>
    %17 = vector.shape_cast %14 : vector<1x128xf32> to vector<1x1x128xf32>
    tpu.vector_store %arg4[%c0_6, %c0_7, %c0_8], %17 {strides = array<i32>} : memref<1x1x128xf32, #tpu.memory_space<vmem>>, vector<1x1x128xf32>,
    return
  }
  func.func @transform_0(%arg0: i32) -> (i32, i32) {
    %c0_i32 = arith.constant 0 : i32
    %c0_i32_0 = arith.constant 0 : i32
    return %arg0, %c0_i32 : i32, i32
  }
  func.func @transform_1(%arg0: i32) -> (i32, i32) {
    %c0_i32 = arith.constant 0 : i32
    %c0_i32_0 = arith.constant 0 : i32
    %c0_i32_1 = arith.constant 0 : i32
    return %c0_i32, %c0_i32_0 : i32, i32
  }
  func.func @transform_2(%arg0: i32) -> (i32, i32) {
    %c0_i32 = arith.constant 0 : i32
    %c0_i32_0 = arith.constant 0 : i32
    %c0_i32_1 = arith.constant 0 : i32
    return %c0_i32, %c0_i32_0 : i32, i32
  }
  func.func @transform_3(%arg0: i32) -> (i32, i32, i32) {
    %c0_i32 = arith.constant 0 : i32
    %c0_i32_0 = arith.constant 0 : i32
    %c0_i32_1 = arith.constant 0 : i32
    return %arg0, %c0_i32, %c0_i32_0 : i32, i32, i32
  }
}

</mosaic_0001>

<llo_original>
// kernel: emotion_logreg_forward.1
$region0: #{emotion_logreg_forward.1}
  #allocation0 [shape = 'u32[]', space=smem, size = 0x4, offset = 0x4, fixed_abs, tag = 'smem constant byte address 0x4 - core index']
  #allocation1 [shape = 'u32[144,128]{1,0:T(1,128)}', space=vmem, size = 0x12000, scoped, tag = 'internal scratch']
  #allocation2 [shape = 'f32[1,1]{1,0:T(1,128)S(6)}', space=smem, size = 0x200, scoped, tag = 'scoped memory for emotion_logreg_forward.1']
  %s0 = inlined_call_operand.vmem [shape: f32[300,42], index: 0, kind: input, shape index: {}]
  %s1 = inlined_call_operand.vmem [shape: f32[1,42], index: 1, kind: input, shape index: {}]
  %s2 = inlined_call_operand.<no memory space> [shape: f32[1,1], index: 2, kind: input, shape index: {}]
  %s3 = inlined_call_operand.hbm [shape: f32[3,1,128], index: 3, kind: output, shape index: {}]
  %s4 = sld [smem:[#allocation0]]
  $region45: #{emotion_logreg_forward.1} parent=0
    _
  %s6 = ssub.s32 1, %s4
  %s7 = scalar_select 0, %s6, %s4
  %8 = sst [smem:[#allocation2]] %s2
  $region1: #{emotion_logreg_forward.1} parent=0
    #allocation3 [shape = 'u8[1024]{0}', space=vmem, size = 0x400, scoped, tag = 'output window, operand 0']
    #allocation4 [shape = 's32[2]{0}', space=sflag, size = 0x8, scoped, tag = 'scoped memory for emotion_logreg_forward.1']
    %9 = vsyncpa [#allocation4], 0
    %s10 = scalar_lea.sflag [#allocation4], 1
    %11 = vsyncpa %s10, 0
    loop: start=0, step=1, limit=5
    $region2: #{emotion_logreg_forward.1} parent=1 // loop_pre_header
      _
    $region3: #{emotion_logreg_forward.1} parent=1 // loop_header
      %s13 = sphi 0, %s17
      %p14 = scmp.ge.s32.totalorder %s13, 5
      %s23 = sphi 0, %s25
      %s26 = sphi 0, %s23
      %s27 = sphi 0, %s26
      %s43 = sphi 0, %s27
      %s47 = sphi 0, %s47
      %s49 = sphi 0, %s47
      %s50 = sphi 0, %s49
      %s64 = sphi 0, %s50
      %s68 = sphi 0, %s68
      %s70 = sphi 0, %s68
      %s71 = sphi 0, %s70
      %s85 = sphi 0, %s71
      %s91 = sphi 0, %s93
      %s94 = sphi 0, %s91
      %s95 = sphi 0, %s94
      %s111 = sphi 0, %s95
    $region4: #{emotion_logreg_forward.1} parent=1 // loop_header_branch
      %16 = sbr.rel (%p14) target = $region8
    $region5: #{emotion_logreg_forward.1} parent=1 // loop_body
      %s18 = ssub.s32 %s13, 1
      %s19 = ssub.s32 %s13, 2
      %s20 = sadd.s32 %s13, 1
      %s21 = ssub.s32 %s13, %s20
      %p22 = scmp.eq.s32.totalorder %s21, 0
      %s24 = sadd.s32 %s23, 1
      %s25 = scalar_select %p22, %s23, %s24
      %p28 = pneg %p22
      %p29 = scmp.eq.s32.totalorder %s13, 2
      %p30 = por %p28, %p29
      %p31 = scmp.ne.s32.totalorder %s23, %s26
      %p32 = scmp.eq.s32.totalorder %s13, 0
      %p33 = por %p31, %p32
      %p34 = scmp.ne.s32.totalorder %s23, %s26
      %p35 = scmp.eq.s32.totalorder %s18, 2
      %p36 = por %p34, %p35
      %p37 = scmp.ne.s32.totalorder %s26, %s27
      %p38 = scmp.eq.s32.totalorder %s18, 0
      %p39 = por %p37, %p38
      %p40 = scmp.ne.s32.totalorder %s26, %s27
      %p41 = scmp.eq.s32.totalorder %s19, 2
      %p42 = por %p40, %p41
      %p44 = scmp.ne.s32.totalorder %s27, %s43
      %p45 = scmp.eq.s32.totalorder %s19, 0
      %p46 = por %p44, %p45
      %s48 = sadd.s32 %s47, 1
      %p51 = scmp.eq.s32.totalorder %s13, 2
      %p52 = scmp.ne.s32.totalorder %s47, %s49
      %p53 = scmp.eq.s32.totalorder %s13, 0
      %p54 = por %p52, %p53
      %p55 = scmp.ne.s32.totalorder %s47, %s49
      %p56 = scmp.eq.s32.totalorder %s18, 2
      %p57 = por %p55, %p56
      %p58 = scmp.ne.s32.totalorder %s49, %s50
      %p59 = scmp.eq.s32.totalorder %s18, 0
      %p60 = por %p58, %p59
      %p61 = scmp.ne.s32.totalorder %s49, %s50
      %p62 = scmp.eq.s32.totalorder %s19, 2
      %p63 = por %p61, %p62
      %p65 = scmp.ne.s32.totalorder %s50, %s64
      %p66 = scmp.eq.s32.totalorder %s19, 0
      %p67 = por %p65, %p66
      %s69 = sadd.s32 %s68, 1
      %p72 = scmp.eq.s32.totalorder %s13, 2
      %p73 = scmp.ne.s32.totalorder %s68, %s70
      %p74 = scmp.eq.s32.totalorder %s13, 0
      %p75 = por %p73, %p74
      %p76 = scmp.ne.s32.totalorder %s68, %s70
      %p77 = scmp.eq.s32.totalorder %s18, 2
      %p78 = por %p76, %p77
      %p79 = scmp.ne.s32.totalorder %s70, %s71
      %p80 = scmp.eq.s32.totalorder %s18, 0
      %p81 = por %p79, %p80
      %p82 = scmp.ne.s32.totalorder %s70, %s71
      %p83 = scmp.eq.s32.totalorder %s19, 2
      %p84 = por %p82, %p83
      %p86 = scmp.ne.s32.totalorder %s71, %s85
      %p87 = scmp.eq.s32.totalorder %s19, 0
      %p88 = por %p86, %p87
      %s89 = ssub.s32 %s13, %s20
      %p90 = scmp.eq.s32.totalorder %s89, 0
      %s92 = sadd.s32 %s91, 1
      %s93 = scalar_select %p90, %s91, %s92
      %p96 = pneg %p90
      %p97 = scmp.eq.s32.totalorder %s13, 2
      %p98 = por %p96, %p97
      %p99 = scmp.ne.s32.totalorder %s91, %s94
      %p100 = scmp.eq.s32.totalorder %s13, 0
      %p101 = por %p99, %p100
      %p102 = scmp.ne.s32.totalorder %s91, %s94
      %p103 = scmp.eq.s32.totalorder %s18, 2
      %p104 = por %p102, %p103
      %p105 = scmp.ne.s32.totalorder %s94, %s95
      %p106 = scmp.eq.s32.totalorder %s18, 0
      %p107 = por %p105, %p106
      %p108 = scmp.ne.s32.totalorder %s94, %s95
      %p109 = scmp.eq.s32.totalorder %s19, 2
      %p110 = por %p108, %p109
      %p112 = scmp.ne.s32.totalorder %s95, %s111
      %p113 = scmp.eq.s32.totalorder %s19, 0
      %p114 = por %p112, %p113
      %p115 = scmp.le.s32.totalorder 1, %s13
      %p116 = scmp.lt.s32.totalorder %s13, 4
      %p117 = pnand %p115, %p116
      %p118 = pneg %p117
      // Predicated region
      $region9: #{emotion_logreg_forward.1} parent=5 // pred_check
        _
      $region10: #{emotion_logreg_forward.1} parent=5 // pred_check_branch
        %120 = sbr.rel (%p117) target = $region12
      $region11: #{emotion_logreg_forward.1} parent=5 // pred_region
        %s121 = ssub.s32 %s13, 1
        // Predicated region
        $region13: #{emotion_logreg_forward.1} parent=11 // pred_check
          %p122 = pneg %p60
        $region14: #{emotion_logreg_forward.1} parent=11 // pred_check_branch
          %124 = sbr.rel (%p122) target = $region16
        $region15: #{emotion_logreg_forward.1} parent=11 // pred_region
          _
        $region16: #{emotion_logreg_forward.1} parent=11 // pred_fallthru
          _
        // Predicated region
        $region17: #{emotion_logreg_forward.1} parent=11 // pred_check
          %p125 = pneg %p81
        $region18: #{emotion_logreg_forward.1} parent=11 // pred_check_branch
          %127 = sbr.rel (%p125) target = $region20
        $region19: #{emotion_logreg_forward.1} parent=11 // pred_region
          _
        $region20: #{emotion_logreg_forward.1} parent=11 // pred_fallthru
          _
      $region12: #{emotion_logreg_forward.1} parent=5 // pred_fallthru
        _
      %p128 = scmp.lt.s32.totalorder %s13, 3
      // Predicated region
      $region21: #{emotion_logreg_forward.1} parent=5 // pred_check
        %p129 = pneg %p128
      $region22: #{emotion_logreg_forward.1} parent=5 // pred_check_branch
        %131 = sbr.rel (%p129) target = $region24
      $region23: #{emotion_logreg_forward.1} parent=5 // pred_region
        // Predicated region
        $region25: #{emotion_logreg_forward.1} parent=23 // pred_check
          %p132 = pneg %p33
        $region26: #{emotion_logreg_forward.1} parent=23 // pred_check_branch
          %134 = sbr.rel (%p132) target = $region28
        $region27: #{emotion_logreg_forward.1} parent=23 // pred_region
          %s135 = smul.u32 16, %s13
          %s136 = ssub.s32 38, %s135
          %p137 = scmp.lt.s32.totalorder %s136, 16
          %s138 = scalar_select %p137, %s136, 16
          %s139 = smul.u32 128, %s138
          %p140 = scmp.lt.s32.totalorder %s135, 37
          %s141 = scalar_select %p140, %s135, 37
          %s142 = smul.addr %s141, 8
          %s143 = scalar_lea.vmem %s0, %s142
          %s144 = smul.u32 16, %s13
          %s145 = ssub.s32 38, %s144
          %p146 = scmp.lt.s32.totalorder %s145, 16
          %s147 = scalar_select %p146, %s145, 16
          %s148 = smul.u32 128, %s147
        $region28: #{emotion_logreg_forward.1} parent=23 // pred_fallthru
          _
      $region24: #{emotion_logreg_forward.1} parent=5 // pred_fallthru
        _
      %p149 = scmp.le.s32.totalorder 1, %s13
      %p150 = scmp.lt.s32.totalorder %s13, 4
      %p151 = pnand %p149, %p150
      %p152 = pneg %p151
      // Predicated region
      $region29: #{emotion_logreg_forward.1} parent=5 // pred_check
        _
      $region30: #{emotion_logreg_forward.1} parent=5 // pred_check_branch
        %154 = sbr.rel (%p151) target = $region32
      $region31: #{emotion_logreg_forward.1} parent=5 // pred_region
        %s155 = ssub.s32 %s13, 1
        %s156 = smul.u32 16, %s18
        %s157 = ssub.s32 38, %s156
        %p158 = scmp.lt.s32.totalorder %s157, 16
        %s159 = scalar_select %p158, %s157, 16
        %s160 = smul.u32 128, %s159
        %p161 = scmp.lt.s32.totalorder %s156, 37
        %s162 = scalar_select %p161, %s156, 37
        %s163 = smul.addr %s162, 8
        %s164 = scalar_lea.vmem %s0, %s163
        %p165 = pneg %p39
        %p166 = pneg %p36
        %p167 = pneg %p60
        %p168 = pneg %p57
        %p169 = pneg %p81
        %p170 = pneg %p78
        %p171 = pneg %p107
        %p172 = pneg %p104
        %s173 = sand.u32 %s94, 1
        %s174 = scalar_lea.sflag [#allocation4], %s173
        %s175 = sand.u32 %s94, 1
        %s176 = scalar_lea.vmem [#allocation3], %s175
        %s177 = smul.u32 16, %s18
        %s178 = ssub.s32 38, %s177
        %p179 = scmp.lt.s32.totalorder %s178, 16
        %s180 = scalar_select %p179, %s178, 16
        %s181 = smul.u32 128, %s180
        %p182 = scmp.lt.s32.totalorder %s177, 37
        %s183 = scalar_select %p182, %s177, 37
        %s184 = smul.addr %s183, 8
        %s185 = scalar_lea.vmem %s0, %s184
        %s186 = smul.u32 16, %s18
        %s187 = ssub.s32 38, %s186
        %p188 = scmp.lt.s32.totalorder %s187, 16
        %s189 = scalar_select %p188, %s187, 16
        %s190 = smul.u32 128, %s189
        %v191 = vld [vmem:[%s185] sm:$0xff]
        %v192 = vld [vmem:[%s185 + $0x8] sm:$0xff]
        %v193 = vld [vmem:[%s185 + $0x10] sm:$0xff]
        %v194 = vld [vmem:[%s185 + $0x18] sm:$0xff]
        %v195 = vld [vmem:[%s185 + $0x20] sm:$0xff]
        %v196 = vld [vmem:[%s185 + $0x28] sm:$0xff]
        %v197 = vld [vmem:[%s185 + $0x30] sm:$0xff]
        %v198 = vld [vmem:[%s185 + $0x38] sm:$0xff]
        %v199 = vld [vmem:[%s185 + $0x40] sm:$0xff]
        %v200 = vld [vmem:[%s185 + $0x48] sm:$0xff]
        %v201 = vld [vmem:[%s185 + $0x50] sm:$0xff]
        %v202 = vld [vmem:[%s185 + $0x58] sm:$0xff]
        %v203 = vld [vmem:[%s185 + $0x60] sm:$0xff]
        %v204 = vld [vmem:[%s185 + $0x68] sm:$0xff]
        %v205 = vld [vmem:[%s185 + $0x70] sm:$0xff]
        %v206 = vld [vmem:[%s185 + $0x78] sm:$0xff]
        %v207 = vld [vmem:[%s1] sm:$0x1]
        %v209 = vlaneseq
        %v210 = vshrl.u32 %v209, 7
        %v211 = vsub.s32 0, %v210
        %v212 = vrot.slane %v207, %v211
        %v214 = vmul.f32 %v191, %v212
        %v215 = vmul.f32 %v192, %v212
        %v216 = vmul.f32 %v193, %v212
        %v217 = vmul.f32 %v194, %v212
        %v218 = vmul.f32 %v195, %v212
        %v219 = vmul.f32 %v196, %v212
        %v220 = vmul.f32 %v197, %v212
        %v221 = vmul.f32 %v198, %v212
        %v222 = vmul.f32 %v199, %v212
        %v223 = vmul.f32 %v200, %v212
        %v224 = vmul.f32 %v201, %v212
        %v225 = vmul.f32 %v202, %v212
        %v226 = vmul.f32 %v203, %v212
        %v227 = vmul.f32 %v204, %v212
        %v228 = vmul.f32 %v205, %v212
        %v229 = vmul.f32 %v206, %v212
        %vm230 = vcmask 343040
        %v231 = vsel %vm230, %v214, 0.0
        %232 = vadd.xlane.f32.xlu0 %v231
        %v233 = vpop.xlane.xlu0 %232
        %v234 = vsel %vm230, %v215, 0.0
        %235 = vadd.xlane.f32.xlu0 %v234
        %v236 = vpop.xlane.xlu0 %235
        %v237 = vsel %vm230, %v216, 0.0
        %238 = vadd.xlane.f32.xlu0 %v237
        %v239 = vpop.xlane.xlu0 %238
        %v240 = vsel %vm230, %v217, 0.0
        %241 = vadd.xlane.f32.xlu0 %v240
        %v242 = vpop.xlane.xlu0 %241
        %v243 = vsel %vm230, %v218, 0.0
        %244 = vadd.xlane.f32.xlu0 %v243
        %v245 = vpop.xlane.xlu0 %244
        %v246 = vsel %vm230, %v219, 0.0
        %247 = vadd.xlane.f32.xlu0 %v246
        %v248 = vpop.xlane.xlu0 %247
        %v249 = vsel %vm230, %v220, 0.0
        %250 = vadd.xlane.f32.xlu0 %v249
        %v251 = vpop.xlane.xlu0 %250
        %v252 = vsel %vm230, %v221, 0.0
        %253 = vadd.xlane.f32.xlu0 %v252
        %v254 = vpop.xlane.xlu0 %253
        %v255 = vsel %vm230, %v222, 0.0
        %256 = vadd.xlane.f32.xlu0 %v255
        %v257 = vpop.xlane.xlu0 %256
        %v258 = vsel %vm230, %v223, 0.0
        %259 = vadd.xlane.f32.xlu0 %v258
        %v260 = vpop.xlane.xlu0 %259
        %v261 = vsel %vm230, %v224, 0.0
        %262 = vadd.xlane.f32.xlu0 %v261
        %v263 = vpop.xlane.xlu0 %262
        %v264 = vsel %vm230, %v225, 0.0
        %265 = vadd.xlane.f32.xlu0 %v264
        %v266 = vpop.xlane.xlu0 %265
        %v267 = vsel %vm230, %v226, 0.0
        %268 = vadd.xlane.f32.xlu0 %v267
        %v269 = vpop.xlane.xlu0 %268
        %v270 = vsel %vm230, %v227, 0.0
        %271 = vadd.xlane.f32.xlu0 %v270
        %v272 = vpop.xlane.xlu0 %271
        %v273 = vsel %vm230, %v228, 0.0
        %274 = vadd.xlane.f32.xlu0 %v273
        %v275 = vpop.xlane.xlu0 %274
        %v276 = vsel %vm230, %v229, 0.0
        %277 = vadd.xlane.f32.xlu0 %v276
        %v278 = vpop.xlane.xlu0 %277
        %s279 = sld [smem:[#allocation2]]
        %v280 = vstv %s279
        %v281 = vadd.f32 %v233, %v280
        %v282 = vadd.f32 %v236, %v280
        %v283 = vadd.f32 %v239, %v280
        %v284 = vadd.f32 %v242, %v280
        %v285 = vadd.f32 %v245, %v280
        %v286 = vadd.f32 %v248, %v280
        %v287 = vadd.f32 %v251, %v280
        %v288 = vadd.f32 %v254, %v280
        %v289 = vadd.f32 %v257, %v280
        %v290 = vadd.f32 %v260, %v280
        %v291 = vadd.f32 %v263, %v280
        %v292 = vadd.f32 %v266, %v280
        %v293 = vadd.f32 %v269, %v280
        %v294 = vadd.f32 %v272, %v280
        %v295 = vadd.f32 %v275, %v280
        %v296 = vadd.f32 %v278, %v280
        %v297 = vxor.u32 %v281, 2147483648
        %v298 = vxor.u32 %v282, 2147483648
        %v299 = vxor.u32 %v283, 2147483648
        %v300 = vxor.u32 %v284, 2147483648
        %v301 = vxor.u32 %v285, 2147483648
        %v302 = vxor.u32 %v286, 2147483648
        %v303 = vxor.u32 %v287, 2147483648
        %v304 = vxor.u32 %v288, 2147483648
        %v305 = vxor.u32 %v289, 2147483648
        %v306 = vxor.u32 %v290, 2147483648
        %v307 = vxor.u32 %v291, 2147483648
        %v308 = vxor.u32 %v292, 2147483648
        %v309 = vxor.u32 %v293, 2147483648
        %v310 = vxor.u32 %v294, 2147483648
        %v311 = vxor.u32 %v295, 2147483648
        %v312 = vxor.u32 %v296, 2147483648
        %v313 = vmul.f32 %v297, 1.442695
        %v314 = vpow.pop %v313
        %v315 = vmul.f32 %v298, 1.442695
        %v316 = vpow.pop %v315
        %v317 = vmul.f32 %v299, 1.442695
        %v318 = vpow.pop %v317
        %v319 = vmul.f32 %v300, 1.442695
        %v320 = vpow.pop %v319
        %v321 = vmul.f32 %v301, 1.442695
        %v322 = vpow.pop %v321
        %v323 = vmul.f32 %v302, 1.442695
        %v324 = vpow.pop %v323
        %v325 = vmul.f32 %v303, 1.442695
        %v326 = vpow.pop %v325
        %v327 = vmul.f32 %v304, 1.442695
        %v328 = vpow.pop %v327
        %v329 = vmul.f32 %v305, 1.442695
        %v330 = vpow.pop %v329
        %v331 = vmul.f32 %v306, 1.442695
        %v332 = vpow.pop %v331
        %v333 = vmul.f32 %v307, 1.442695
        %v334 = vpow.pop %v333
        %v335 = vmul.f32 %v308, 1.442695
        %v336 = vpow.pop %v335
        %v337 = vmul.f32 %v309, 1.442695
        %v338 = vpow.pop %v337
        %v339 = vmul.f32 %v310, 1.442695
        %v340 = vpow.pop %v339
        %v341 = vmul.f32 %v311, 1.442695
        %v342 = vpow.pop %v341
        %v343 = vmul.f32 %v312, 1.442695
        %v344 = vpow.pop %v343
        %v345 = vadd.f32 %v314, 1.0
        %v346 = vadd.f32 %v316, 1.0
        %v347 = vadd.f32 %v318, 1.0
        %v348 = vadd.f32 %v320, 1.0
        %v349 = vadd.f32 %v322, 1.0
        %v350 = vadd.f32 %v324, 1.0
        %v351 = vadd.f32 %v326, 1.0
        %v352 = vadd.f32 %v328, 1.0
        %v353 = vadd.f32 %v330, 1.0
        %v354 = vadd.f32 %v332, 1.0
        %v355 = vadd.f32 %v334, 1.0
        %v356 = vadd.f32 %v336, 1.0
        %v357 = vadd.f32 %v338, 1.0
        %v358 = vadd.f32 %v340, 1.0
        %v359 = vadd.f32 %v342, 1.0
        %v360 = vadd.f32 %v344, 1.0
        %v361 = vrcp.pop %v345
        %v362 = vmul.f32 1.0, %v361
        %v363 = vrcp.pop %v346
        %v364 = vmul.f32 1.0, %v363
        %v365 = vrcp.pop %v347
        %v366 = vmul.f32 1.0, %v365
        %v367 = vrcp.pop %v348
        %v368 = vmul.f32 1.0, %v367
        %v369 = vrcp.pop %v349
        %v370 = vmul.f32 1.0, %v369
        %v371 = vrcp.pop %v350
        %v372 = vmul.f32 1.0, %v371
        %v373 = vrcp.pop %v351
        %v374 = vmul.f32 1.0, %v373
        %v375 = vrcp.pop %v352
        %v376 = vmul.f32 1.0, %v375
        %v377 = vrcp.pop %v353
        %v378 = vmul.f32 1.0, %v377
        %v379 = vrcp.pop %v354
        %v380 = vmul.f32 1.0, %v379
        %v381 = vrcp.pop %v355
        %v382 = vmul.f32 1.0, %v381
        %v383 = vrcp.pop %v356
        %v384 = vmul.f32 1.0, %v383
        %v385 = vrcp.pop %v357
        %v386 = vmul.f32 1.0, %v385
        %v387 = vrcp.pop %v358
        %v388 = vmul.f32 1.0, %v387
        %v389 = vrcp.pop %v359
        %v390 = vmul.f32 1.0, %v389
        %v391 = vrcp.pop %v360
        %v392 = vmul.f32 1.0, %v391
        %v409 = vlaneseq
        %v410 = vand.u32 %v409, 127
        %v411 = vlaneseq
        %v412 = vshrl.u32 %v411, 7
        %v413 = vsub.s32 %v410, %v412
        %v414 = vrot.slane %v362, %v413
        %v415 = vadd.s32 %v410, 4294967288
        %v416 = vlaneseq
        %v417 = vshrl.u32 %v416, 7
        %v418 = vsub.s32 %v415, %v417
        %v419 = vrot.slane %v364, %v418
        %vm420 = vcmask 130112
        %v421 = vsel %vm420, %v419, %v414
        %v422 = vadd.s32 %v410, 4294967280
        %v423 = vlaneseq
        %v424 = vshrl.u32 %v423, 7
        %v425 = vsub.s32 %v422, %v424
        %v426 = vrot.slane %v366, %v425
        %vm427 = vcmask 195712
        %v428 = vsel %vm427, %v426, %v421
        %v429 = vadd.s32 %v410, 4294967272
        %v430 = vlaneseq
        %v431 = vshrl.u32 %v430, 7
        %v432 = vsub.s32 %v429, %v431
        %v433 = vrot.slane %v368, %v432
        %vm434 = vcmask 261312
        %v435 = vsel %vm434, %v433, %v428
        %v436 = vadd.s32 %v410, 4294967264
        %v437 = vlaneseq
        %v438 = vshrl.u32 %v437, 7
        %v439 = vsub.s32 %v436, %v438
        %v440 = vrot.slane %v370, %v439
        %vm441 = vcmask 326912
        %v442 = vsel %vm441, %v440, %v435
        %v443 = vadd.s32 %v410, 4294967256
        %v444 = vlaneseq
        %v445 = vshrl.u32 %v444, 7
        %v446 = vsub.s32 %v443, %v445
        %v447 = vrot.slane %v372, %v446
        %vm448 = vcmask 392512
        %v449 = vsel %vm448, %v447, %v442
        %v450 = vadd.s32 %v410, 4294967248
        %v451 = vlaneseq
        %v452 = vshrl.u32 %v451, 7
        %v453 = vsub.s32 %v450, %v452
        %v454 = vrot.slane %v374, %v453
        %vm455 = vcmask 458112
        %v456 = vsel %vm455, %v454, %v449
        %v457 = vadd.s32 %v410, 4294967240
        %v458 = vlaneseq
        %v459 = vshrl.u32 %v458, 7
        %v460 = vsub.s32 %v457, %v459
        %v461 = vrot.slane %v376, %v460
        %vm462 = vcmask 523712
        %v463 = vsel %vm462, %v461, %v456
        %v464 = vadd.s32 %v410, 4294967232
        %v465 = vlaneseq
        %v466 = vshrl.u32 %v465, 7
        %v467 = vsub.s32 %v464, %v466
        %v468 = vrot.slane %v378, %v467
        %vm469 = vcmask 589312
        %v470 = vsel %vm469, %v468, %v463
        %v471 = vadd.s32 %v410, 4294967224
        %v472 = vlaneseq
        %v473 = vshrl.u32 %v472, 7
        %v474 = vsub.s32 %v471, %v473
        %v475 = vrot.slane %v380, %v474
        %vm476 = vcmask 654912
        %v477 = vsel %vm476, %v475, %v470
        %v478 = vadd.s32 %v410, 4294967216
        %v479 = vlaneseq
        %v480 = vshrl.u32 %v479, 7
        %v481 = vsub.s32 %v478, %v480
        %v482 = vrot.slane %v382, %v481
        %vm483 = vcmask 720512
        %v484 = vsel %vm483, %v482, %v477
        %v485 = vadd.s32 %v410, 4294967208
        %v486 = vlaneseq
        %v487 = vshrl.u32 %v486, 7
        %v488 = vsub.s32 %v485, %v487
        %v489 = vrot.slane %v384, %v488
        %vm490 = vcmask 786112
        %v491 = vsel %vm490, %v489, %v484
        %v492 = vadd.s32 %v410, 4294967200
        %v493 = vlaneseq
        %v494 = vshrl.u32 %v493, 7
        %v495 = vsub.s32 %v492, %v494
        %v496 = vrot.slane %v386, %v495
        %vm497 = vcmask 851712
        %v498 = vsel %vm497, %v496, %v491
        %v499 = vadd.s32 %v410, 4294967192
        %v500 = vlaneseq
        %v501 = vshrl.u32 %v500, 7
        %v502 = vsub.s32 %v499, %v501
        %v503 = vrot.slane %v388, %v502
        %vm504 = vcmask 917312
        %v505 = vsel %vm504, %v503, %v498
        %v506 = vadd.s32 %v410, 4294967184
        %v507 = vlaneseq
        %v508 = vshrl.u32 %v507, 7
        %v509 = vsub.s32 %v506, %v508
        %v510 = vrot.slane %v390, %v509
        %vm511 = vcmask 982912
        %v512 = vsel %vm511, %v510, %v505
        %v513 = vadd.s32 %v410, 4294967176
        %v514 = vlaneseq
        %v515 = vshrl.u32 %v514, 7
        %v516 = vsub.s32 %v513, %v515
        %v517 = vrot.slane %v392, %v516
        %vm518 = vcmask 1048512
        %v519 = vsel %vm518, %v517, %v512
        %521 = vst [vmem:[%s176] sm:$0x1] %v519
        %s522 = sand.u32 %s94, 1
        %s523 = scalar_lea.sflag [#allocation4], %s522
        %s524 = sand.u32 %s94, 1
        %s525 = scalar_lea.vmem [#allocation3], %s524
        // Predicated region
        $region33: #{emotion_logreg_forward.1} parent=31 // pred_check
          %p526 = pneg %p104
        $region34: #{emotion_logreg_forward.1} parent=31 // pred_check_branch
          %528 = sbr.rel (%p526) target = $region36
        $region35: #{emotion_logreg_forward.1} parent=31 // pred_region
          %s530 = ssub.s32 16, 16
          %531 = vsyncadd %s523, %s530
          %s532 = smul.addr %s18, 16
          %s533 = scalar_lea.hbm %s3, %s532
          %s535 = sshll.u32 %s525, 4
          %s536 = int_to_ptr.vmem [resolvable:$true] %s535
          %538 = dma.vmem_to_hbm [thread:$0]  %s536, 16, %s533, %s523
        $region36: #{emotion_logreg_forward.1} parent=31 // pred_fallthru
          _
      $region32: #{emotion_logreg_forward.1} parent=5 // pred_fallthru
        _
      %p539 = scmp.le.s32.totalorder 2, %s13
      // Predicated region
      $region37: #{emotion_logreg_forward.1} parent=5 // pred_check
        %p540 = pneg %p539
      $region38: #{emotion_logreg_forward.1} parent=5 // pred_check_branch
        %542 = sbr.rel (%p540) target = $region40
      $region39: #{emotion_logreg_forward.1} parent=5 // pred_region
        %s543 = ssub.s32 %s13, 2
        // Predicated region
        $region41: #{emotion_logreg_forward.1} parent=39 // pred_check
          %p544 = pneg %p110
        $region42: #{emotion_logreg_forward.1} parent=39 // pred_check_branch
          %546 = sbr.rel (%p544) target = $region44
        $region43: #{emotion_logreg_forward.1} parent=39 // pred_region
          %s547 = sand.u32 %s95, 1
          %s548 = scalar_lea.sflag [#allocation4], %s547
          %s549 = sand.u32 %s95, 1
          %s550 = scalar_lea.vmem [#allocation3], %s549
          %551 = dma.done %s548, 16
        $region44: #{emotion_logreg_forward.1} parent=39 // pred_fallthru
          _
      $region40: #{emotion_logreg_forward.1} parent=5 // pred_fallthru
        _
    $region6: #{emotion_logreg_forward.1} parent=1 // loop_footer
      %s17 = sadd.s32 1, %s13
    $region7: #{emotion_logreg_forward.1} parent=1 // loop_footer_branch
      %12 = sbr.rel target = $region3
    $region8: #{emotion_logreg_forward.1} parent=1 // loop_exit
      _
    %552 = vsyncpa [#allocation4], 1
    %s553 = scalar_lea.sflag [#allocation4], 1
    %554 = vsyncpa %s553, 1

</llo_original>
